<compile_context>
chip_gen: v7x
topology: tpu7x:2x2x1
jax: 0.10.0
libtpu: 0.0.40
codegen_flags: <defaults>
</compile_context>

<pallas_src>
import jax
import jax.numpy as jnp
from jax.experimental import pallas as pl
from jax.experimental.pallas import tpu as pltpu


def _round_up(x: int, m: int) -> int:
    return ((x + m - 1) // m) * m


def _pick_block_b(B: int, D: int, itemsize: int) -> int:
    """Batch-tile rows: ~3 MiB of activation traffic (clip+swin+out) per step."""
    tb = (1 << 20) // max(1, D * itemsize)           # ~1 MiB per activation tile
    tb = max(8, min(_round_up(tb, 8), 4096))
    bp = _round_up(B, 8)
    tb = min(tb, bp)
    # Keep >= 2 grid steps when possible so v7x's two TensorCores share the
    # "parallel" batch axis (v5e/v6e have 1 TC and are unaffected).
    if bp >= 16:
        tb = min(tb, _round_up(-(-bp // 2), 8))
    return tb


def attention_fusion_kernel(clip_ref, swin_ref, w1a_ref, w1b_ref, b1_ref,
                            w2_ref, b2_ref, out_ref):
    # Native-dtype tiles from HBM; arithmetic in f32 vregs.
    clip = clip_ref[...].astype(jnp.float32)               # (TB, D)
    swin = swin_ref[...].astype(jnp.float32)                # (TB, D)

    # First linear on the (virtual) concatenation [clip, swin] (MXU).
    h = (jnp.dot(clip, w1a_ref[...], preferred_element_type=jnp.float32)
         + jnp.dot(swin, w1b_ref[...], preferred_element_type=jnp.float32)
         + b1_ref[...])                                     # (TB, D)
    h = jnp.maximum(h, 0.0)                                 # ReLU (VPU)

    # Second linear (D -> 1): VPU multiply + cross-lane reduce; b2 from SMEM.
    logit = jnp.sum(h * w2_ref[...], axis=-1, keepdims=True) + b2_ref[0, 0]
    attn = jax.nn.sigmoid(logit)                            # (TB, 1), EUP

    # attn*clip + (1-attn)*swin == swin + attn*(clip - swin)
    out_ref[...] = (swin + attn * (clip - swin)).astype(out_ref.dtype)


def attention_fusion(clip_features, swin_features, w1, b1, w2, b2, *,
                     block_b=None):
    """clip/swin: (B, D). w1: (2D, D), b1: (D,), w2: (D, 1), b2: (1,)."""
    B, D = clip_features.shape
    assert swin_features.shape == (B, D)
    assert w1.shape == (2 * D, D) and b1.shape == (D,)
    assert w2.shape == (D, 1) and b2.shape == (1,)
    out_dtype = clip_features.dtype
    in_itemsize = jnp.dtype(out_dtype).itemsize

    Bp = _round_up(B, 8)
    if block_b is None:
        TB = _pick_block_b(B, D, in_itemsize)
    else:
        TB = max(8, _round_up(min(int(block_b), Bp), 8))

    # Activations go in untouched (native dtype, unpadded lanes); only the
    # batch is padded, and only up to the next multiple of 8 rows.
    if Bp != B:
        pad_rows = ((0, Bp - B), (0, 0))
        clip_in = jnp.pad(clip_features, pad_rows)
        swin_in = jnp.pad(swin_features, pad_rows)
    else:
        clip_in, swin_in = clip_features, swin_features

    # Small, one-time weight prep (f32 compute path; v5e has no bf16 VPU).
    w1a = w1[:D, :].astype(jnp.float32)                     # clip half of concat
    w1b = w1[D:, :].astype(jnp.float32)                     # swin half of concat
    b1_row = b1.reshape(1, D).astype(jnp.float32)
    w2_row = w2.reshape(1, D).astype(jnp.float32)           # (D,1) -> (1,D)
    b2_smem = b2.reshape(1, 1).astype(jnp.float32)

    grid = (pl.cdiv(Bp, TB),)
    row_spec = pl.BlockSpec((TB, D), lambda i: (i, 0))
    resident = lambda shape: pl.BlockSpec(shape, lambda i: (0,) * len(shape))

    # VMEM budget: double-buffered row tiles + resident weights (+ headroom),
    # capped at 48 MiB so v7x's 64 MiB physical VMEM keeps compiler scratch.
    vmem_need = (4 * TB * D * in_itemsize      # clip + swin tiles, x2 buffers
                 + 2 * TB * D * in_itemsize    # out tile, x2 buffers
                 + 4 * D * D * 4               # w1a + w1b (allow x2 buffers)
                 + 8 * D * 4 + 1024)           # b1 / w2 rows + slack
    vmem_limit = int(min(max(2 * vmem_need, 16 << 20), 48 << 20))

    cost = pl.CostEstimate(
        flops=4 * B * D * D + 10 * B * D,
        transcendentals=B,
        bytes_accessed=in_itemsize * 3 * B * D + 4 * (2 * D * D + 2 * D + 1),
    )

    out_p = pl.pallas_call(
        attention_fusion_kernel,
        out_shape=jax.ShapeDtypeStruct((Bp, D), out_dtype),
        grid=grid,
        in_specs=[
            row_spec,                 # clip tile
            row_spec,                 # swin tile
            resident((D, D)),         # w1a (constant index -> stays in VMEM)
            resident((D, D)),         # w1b
            resident((1, D)),         # b1 row
            resident((1, D)),         # w2 row
            pl.BlockSpec(memory_space=pltpu.MemorySpace.SMEM),   # b2 scalar
        ],
        out_specs=row_spec,
        compiler_params=pltpu.CompilerParams(
            dimension_semantics=("parallel",),
            vmem_limit_bytes=vmem_limit),
        cost_estimate=cost,
    )(clip_in, swin_in, w1a, w1b, b1_row, w2_row, b2_smem)

    return out_p if Bp == B else out_p[:B]


def reference(clip_features, swin_features, w1, b1, w2, b2):
    combined = jnp.concatenate([clip_features, swin_features], axis=1)
    h = jnp.maximum(combined @ w1 + b1, 0.0)
    attn = jax.nn.sigmoid(h @ w2 + b2)
    return attn * clip_features + (1.0 - attn) * swin_features


if __name__ == "__main__":
    key = jax.random.PRNGKey(0)

    def make(B, D, k):
        ks = jax.random.split(k, 6)
        clip = jax.random.normal(ks[0], (B, D), dtype=jnp.float32)
        swin = jax.random.normal(ks[1], (B, D), dtype=jnp.float32)
        w1 = jax.random.normal(ks[2], (2 * D, D), dtype=jnp.float32) * 0.1
        b1 = jax.random.normal(ks[3], (D,), dtype=jnp.float32) * 0.1
        w2 = jax.random.normal(ks[4], (D, 1), dtype=jnp.float32) * 0.1
        b2 = jax.random.normal(ks[5], (1,), dtype=jnp.float32) * 0.1
        return clip, swin, w1, b1, w2, b2

    k1, k2 = jax.random.split(key)

    # Small shape matching AttentionFusion(input_size=32), batch=2.
    args = make(2, 32, k1)
    out = jax.block_until_ready(attention_fusion(*args))
    ref = reference(*args)
    assert out.shape == (2, 32)
    assert jnp.allclose(out, ref, atol=1e-5, rtol=1e-5), "mismatch (small)"

    # Multi-tile, non-128-multiple feature dim (exercises batch tiling and the
    # unpadded lane path).
    args2 = make(20, 160, k2)
    out2 = jax.block_until_ready(attention_fusion(*args2, block_b=8))
    ref2 = reference(*args2)
    assert out2.shape == (20, 160)
    assert jnp.allclose(out2, ref2, atol=1e-5, rtol=1e-5), "mismatch (tiled)"

    # Partial last batch block (grid = cdiv, masked store on the final tile).
    out3 = jax.block_until_ready(attention_fusion(*args2, block_b=16))
    assert out3.shape == (20, 160)
    assert jnp.allclose(out3, ref2, atol=1e-5, rtol=1e-5), "mismatch (partial)"

    print("KERNEL_OK")
</pallas_src>

<mosaic_0001>
module attributes {stable_mosaic.version = 11 : i64} {
  func.func @attention_fusion_kernel(%arg0: i32, %arg1: memref<8x32xf32, #tpu.memory_space<vmem>>, %arg2: memref<8x32xf32, #tpu.memory_space<vmem>>, %arg3: memref<32x32xf32, #tpu.memory_space<vmem>>, %arg4: memref<32x32xf32, #tpu.memory_space<vmem>>, %arg5: memref<1x32xf32, #tpu.memory_space<vmem>>, %arg6: memref<1x32xf32, #tpu.memory_space<vmem>>, %arg7: memref<1x1xf32, #tpu.memory_space<smem>>, %arg8: memref<8x32xf32, #tpu.memory_space<vmem>>) attributes {dimension_semantics = [#tpu.dimension_semantics<parallel>], iteration_bounds = array<i64: 1>, scalar_prefetch = 0 : i64, scratch_operands = 0 : i64, tpu.core_type = #tpu.core_type<tc>, window_params = [{transform_indices = @transform_0, window_bounds = array<i64: 8, 32>}, {transform_indices = @transform_1, window_bounds = array<i64: 8, 32>}, {pipeline_mode = #tpu.pipeline_mode<synchronous>, transform_indices = @transform_2, window_bounds = array<i64: 32, 32>}, {pipeline_mode = #tpu.pipeline_mode<synchronous>, transform_indices = @transform_3, window_bounds = array<i64: 32, 32>}, {pipeline_mode = #tpu.pipeline_mode<synchronous>, transform_indices = @transform_4, window_bounds = array<i64: 1, 32>}, {pipeline_mode = #tpu.pipeline_mode<synchronous>, transform_indices = @transform_5, window_bounds = array<i64: 1, 32>}, {transform_indices = @transform_6, window_bounds = array<i64: 1, 1>}, {transform_indices = @transform_7, window_bounds = array<i64: 8, 32>}]} {
    %c0 = arith.constant 0 : index
    %c0_0 = arith.constant 0 : index
    %0 = vector.load %arg1[%c0, %c0_0] : memref<8x32xf32, #tpu.memory_space<vmem>>, vector<8x32xf32>
    %c0_1 = arith.constant 0 : index
    %c0_2 = arith.constant 0 : index
    %1 = vector.load %arg2[%c0_1, %c0_2] : memref<8x32xf32, #tpu.memory_space<vmem>>, vector<8x32xf32>
    %c0_3 = arith.constant 0 : index
    %c0_4 = arith.constant 0 : index
    %2 = vector.load %arg3[%c0_3, %c0_4] : memref<32x32xf32, #tpu.memory_space<vmem>>, vector<32x32xf32>
    %cst = arith.constant dense<0.000000e+00> : vector<8x32xf32>
    %3 = tpu.matmul %0, %2, %cst {dimension_numbers = #tpu.dot_dimension_numbers<[1], [0], [0], [1], [0, 0, 1, 1], [], []>} : vector<8x32xf32>, vector<32x32xf32>, vector<8x32xf32> -> vector<8x32xf32>
    %c0_5 = arith.constant 0 : index
    %c0_6 = arith.constant 0 : index
    %4 = vector.load %arg4[%c0_5, %c0_6] : memref<32x32xf32, #tpu.memory_space<vmem>>, vector<32x32xf32>
    %cst_7 = arith.constant dense<0.000000e+00> : vector<8x32xf32>
    %5 = tpu.matmul %1, %4, %cst_7 {dimension_numbers = #tpu.dot_dimension_numbers<[1], [0], [0], [1], [0, 0, 1, 1], [], []>} : vector<8x32xf32>, vector<32x32xf32>, vector<8x32xf32> -> vector<8x32xf32>
    %6 = arith.addf %3, %5 : vector<8x32xf32>
    %c0_8 = arith.constant 0 : index
    %c0_9 = arith.constant 0 : index
    %7 = vector.load %arg5[%c0_8, %c0_9] : memref<1x32xf32, #tpu.memory_space<vmem>>, vector<1x32xf32>
    %8 = vector.broadcast %7 : vector<1x32xf32> to vector<8x32xf32>
    %9 = arith.addf %6, %8 : vector<8x32xf32>
    %cst_10 = arith.constant 0.000000e+00 : f32
    %10 = vector.broadcast %cst_10 : f32 to vector<8x32xf32>
    %11 = arith.maximumf %9, %10 : vector<8x32xf32>
    %c0_11 = arith.constant 0 : index
    %c0_12 = arith.constant 0 : index
    %12 = vector.load %arg6[%c0_11, %c0_12] : memref<1x32xf32, #tpu.memory_space<vmem>>, vector<1x32xf32>
    %13 = vector.broadcast %12 : vector<1x32xf32> to vector<8x32xf32>
    %14 = arith.mulf %11, %13 : vector<8x32xf32>
    %cst_13 = arith.constant dense<0.000000e+00> : vector<8xf32>
    %15 = vector.multi_reduction <add>, %14, %cst_13 [1] : vector<8x32xf32> to vector<8xf32>
    %16 = vector.shape_cast %15 : vector<8xf32> to vector<8x1xf32>
    %c0_14 = arith.constant 0 : index
    %c0_15 = arith.constant 0 : index
    %17 = memref.load %arg7[%c0_14, %c0_15] : memref<1x1xf32, #tpu.memory_space<smem>>
    %18 = vector.broadcast %17 : f32 to vector<8x1xf32>
    %19 = arith.addf %16, %18 : vector<8x1xf32>
    %20 = arith.negf %19 : vector<8x1xf32>
    %21 = math.exp %20 : vector<8x1xf32>
    %cst_16 = arith.constant 1.000000e+00 : f32
    %22 = vector.broadcast %cst_16 : f32 to vector<8x1xf32>
    %23 = arith.addf %22, %21 : vector<8x1xf32>
    %24 = arith.divf %22, %23 : vector<8x1xf32>
    %25 = arith.subf %0, %1 : vector<8x32xf32>
    %26 = vector.broadcast %24 : vector<8x1xf32> to vector<8x32xf32>
    %27 = arith.mulf %26, %25 : vector<8x32xf32>
    %28 = arith.addf %1, %27 : vector<8x32xf32>
    %c0_17 = arith.constant 0 : index
    %c0_18 = arith.constant 0 : index
    %29 = vector.load %arg8[%c0_17, %c0_18] : memref<8x32xf32, #tpu.memory_space<vmem>>, vector<8x32xf32>
    tpu.vector_store %arg8[%c0_17, %c0_18], %28 {strides = array<i32>} : memref<8x32xf32, #tpu.memory_space<vmem>>, vector<8x32xf32>,
    return
  }
  func.func @transform_0(%arg0: i32) -> (i32, i32) {
    %c0_i32 = arith.constant 0 : i32
    %c0_i32_0 = arith.constant 0 : i32
    return %arg0, %c0_i32 : i32, i32
  }
  func.func @transform_1(%arg0: i32) -> (i32, i32) {
    %c0_i32 = arith.constant 0 : i32
    %c0_i32_0 = arith.constant 0 : i32
    return %arg0, %c0_i32 : i32, i32
  }
  func.func @transform_2(%arg0: i32) -> (i32, i32) {
    %c0_i32 = arith.constant 0 : i32
    %c0_i32_0 = arith.constant 0 : i32
    %c0_i32_1 = arith.constant 0 : i32
    return %c0_i32, %c0_i32_0 : i32, i32
  }
  func.func @transform_3(%arg0: i32) -> (i32, i32) {
    %c0_i32 = arith.constant 0 : i32
    %c0_i32_0 = arith.constant 0 : i32
    %c0_i32_1 = arith.constant 0 : i32
    return %c0_i32, %c0_i32_0 : i32, i32
  }
  func.func @transform_4(%arg0: i32) -> (i32, i32) {
    %c0_i32 = arith.constant 0 : i32
    %c0_i32_0 = arith.constant 0 : i32
    %c0_i32_1 = arith.constant 0 : i32
    return %c0_i32, %c0_i32_0 : i32, i32
  }
  func.func @transform_5(%arg0: i32) -> (i32, i32) {
    %c0_i32 = arith.constant 0 : i32
    %c0_i32_0 = arith.constant 0 : i32
    %c0_i32_1 = arith.constant 0 : i32
    return %c0_i32, %c0_i32_0 : i32, i32
  }
  func.func @transform_6(%arg0: i32) -> (i32, i32) {
    %c0_i32 = arith.constant 0 : i32
    %c0_i32_0 = arith.constant 0 : i32
    %c0_i32_1 = arith.constant 0 : i32
    return %c0_i32, %c0_i32_0 : i32, i32
  }
  func.func @transform_7(%arg0: i32) -> (i32, i32) {
    %c0_i32 = arith.constant 0 : i32
    %c0_i32_0 = arith.constant 0 : i32
    return %arg0, %c0_i32 : i32, i32
  }
}

</mosaic_0001>

<llo_original>
// kernel: tpu_custom_call.1
$region0: #{tpu_custom_call.1}
  #allocation0 [shape = 'u32[]', space=smem, size = 0x4, offset = 0x4, fixed_abs, tag = 'smem constant byte address 0x4 - core index']
  #allocation1 [shape = 'u32[144,128]{1,0:T(1,128)}', space=vmem, size = 0x12000, scoped, tag = 'internal scratch']
  #allocation2 [shape = 'f32[1,1]{1,0:T(1,128)S(6)}', space=smem, size = 0x200, scoped, tag = 'scoped memory for tpu_custom_call.1']
  %s0 = inlined_call_operand.hbm [shape: f32[8,32], index: 0, kind: input, shape index: {}]
  %s1 = inlined_call_operand.hbm [shape: f32[8,32], index: 1, kind: input, shape index: {}]
  %s2 = inlined_call_operand.hbm [shape: f32[32,32], index: 2, kind: input, shape index: {}]
  %s3 = inlined_call_operand.hbm [shape: f32[32,32], index: 3, kind: input, shape index: {}]
  %s4 = inlined_call_operand.vmem [shape: f32[1,32], index: 4, kind: input, shape index: {}]
  %s5 = inlined_call_operand.vmem [shape: f32[1,32], index: 5, kind: input, shape index: {}]
  %s6 = inlined_call_operand.<no memory space> [shape: f32[1,1], index: 6, kind: input, shape index: {}]
  %s7 = inlined_call_operand.hbm [shape: f32[8,32], index: 7, kind: output, shape index: {}]
  %s8 = sld [smem:[#allocation0]]
  $region54: #{tpu_custom_call.1} parent=0
    _
  %s10 = ssub.s32 1, %s8
  %s11 = scalar_select 0, %s10, %s8
  %12 = sst [smem:[#allocation2]] %s6
  $region1: #{tpu_custom_call.1} parent=0
    #allocation3 [shape = 'u8[4096]{0}', space=vmem, size = 0x1000, scoped, tag = 'input window, operand 0, single buffered']
    #allocation4 [shape = 's32[1]{0}', space=sflag, size = 0x4, scoped, tag = 'scoped memory for tpu_custom_call.1']
    #allocation5 [shape = 's32[1]{0}', space=sflag, size = 0x4, scoped, tag = 'scoped memory for tpu_custom_call.1']
    #allocation6 [shape = 'u8[4096]{0}', space=vmem, size = 0x1000, scoped, tag = 'input window, operand 1, single buffered']
    #allocation7 [shape = 's32[1]{0}', space=sflag, size = 0x4, scoped, tag = 'scoped memory for tpu_custom_call.1']
    #allocation8 [shape = 'u8[16384]{0}', space=vmem, size = 0x4000, scoped, tag = 'input window, operand 2, single buffered']
    #allocation9 [shape = 'u8[16384]{0}', space=vmem, size = 0x4000, scoped, tag = 'input window, operand 3, single buffered']
    #allocation10 [shape = 's32[1]{0}', space=sflag, size = 0x4, scoped, tag = 'scoped memory for tpu_custom_call.1']
    #allocation11 [shape = 'u8[4096]{0}', space=vmem, size = 0x1000, scoped, tag = 'output window, operand 0, single buffered']
    %13 = vsyncpa [#allocation4], 0
    %14 = vsyncpa [#allocation7], 0
    %15 = vsyncpa [#allocation10], 0
    %16 = vsyncpa [#allocation5], 0
    // Predicated region
    $region2: #{tpu_custom_call.1} parent=1 // pred_check
      _
    $region3: #{tpu_custom_call.1} parent=1 // pred_check_branch
      %18 = sbr.rel (0) target = $region5
    $region4: #{tpu_custom_call.1} parent=1 // pred_region
      %s20 = ssub.s32 128, 128
      %21 = vsyncadd [#allocation4], %s20
      %s23 = sshll.u32 [#allocation3], 4
      %s24 = int_to_ptr.vmem [resolvable:$true] %s23
      %26 = dma.hbm_to_vmem [thread:$0]  %s0, 128, %s24, [#allocation4]
    $region5: #{tpu_custom_call.1} parent=1 // pred_fallthru
      _
    // Predicated region
    $region6: #{tpu_custom_call.1} parent=1 // pred_check
      _
    $region7: #{tpu_custom_call.1} parent=1 // pred_check_branch
      %28 = sbr.rel (0) target = $region9
    $region8: #{tpu_custom_call.1} parent=1 // pred_region
      %s30 = ssub.s32 128, 128
      %31 = vsyncadd [#allocation7], %s30
      %s33 = sshll.u32 [#allocation6], 4
      %s34 = int_to_ptr.vmem [resolvable:$true] %s33
      %36 = dma.hbm_to_vmem [thread:$0]  %s1, 128, %s34, [#allocation7]
    $region9: #{tpu_custom_call.1} parent=1 // pred_fallthru
      _
    // Predicated region
    $region10: #{tpu_custom_call.1} parent=1 // pred_check
      _
    $region11: #{tpu_custom_call.1} parent=1 // pred_check_branch
      %38 = sbr.rel (0) target = $region13
    $region12: #{tpu_custom_call.1} parent=1 // pred_region
      %s40 = ssub.s32 512, 512
      %41 = vsyncadd [#allocation7], %s40
      %s42 = sshll.u32 [#allocation8], 4
      %s43 = int_to_ptr.vmem [resolvable:$true] %s42
      %48 = dma.hbm_to_vmem [thread:$0]  %s2, 512, %s43, [#allocation7], 128, 128, 8
    $region13: #{tpu_custom_call.1} parent=1 // pred_fallthru
      _
    // Predicated region
    $region14: #{tpu_custom_call.1} parent=1 // pred_check
      _
    $region15: #{tpu_custom_call.1} parent=1 // pred_check_branch
      %50 = sbr.rel (0) target = $region17
    $region16: #{tpu_custom_call.1} parent=1 // pred_region
      %s52 = ssub.s32 512, 512
      %53 = vsyncadd [#allocation10], %s52
      %s54 = sshll.u32 [#allocation9], 4
      %s55 = int_to_ptr.vmem [resolvable:$true] %s54
      %60 = dma.hbm_to_vmem [thread:$0]  %s3, 512, %s55, [#allocation10], 128, 128, 8
    $region17: #{tpu_custom_call.1} parent=1 // pred_fallthru
      _
    // Predicated region
    $region18: #{tpu_custom_call.1} parent=1 // pred_check
      _
    $region19: #{tpu_custom_call.1} parent=1 // pred_check_branch
      %62 = sbr.rel (0) target = $region21
    $region20: #{tpu_custom_call.1} parent=1 // pred_region
      _
    $region21: #{tpu_custom_call.1} parent=1 // pred_fallthru
      _
    // Predicated region
    $region22: #{tpu_custom_call.1} parent=1 // pred_check
      _
    $region23: #{tpu_custom_call.1} parent=1 // pred_check_branch
      %64 = sbr.rel (0) target = $region25
    $region24: #{tpu_custom_call.1} parent=1 // pred_region
      _
    $region25: #{tpu_custom_call.1} parent=1 // pred_fallthru
      _
    // Predicated region
    $region26: #{tpu_custom_call.1} parent=1 // pred_check
      _
    $region27: #{tpu_custom_call.1} parent=1 // pred_check_branch
      %66 = sbr.rel (0) target = $region29
    $region28: #{tpu_custom_call.1} parent=1 // pred_region
      _
    $region29: #{tpu_custom_call.1} parent=1 // pred_fallthru
      _
    // Predicated region
    $region30: #{tpu_custom_call.1} parent=1 // pred_check
      _
    $region31: #{tpu_custom_call.1} parent=1 // pred_check_branch
      %68 = sbr.rel (0) target = $region33
    $region32: #{tpu_custom_call.1} parent=1 // pred_region
      %69 = dma.done [#allocation4], 128
    $region33: #{tpu_custom_call.1} parent=1 // pred_fallthru
      _
    // Predicated region
    $region34: #{tpu_custom_call.1} parent=1 // pred_check
      _
    $region35: #{tpu_custom_call.1} parent=1 // pred_check_branch
      %71 = sbr.rel (0) target = $region37
    $region36: #{tpu_custom_call.1} parent=1 // pred_region
      %72 = dma.done [#allocation7], 128
    $region37: #{tpu_custom_call.1} parent=1 // pred_fallthru
      _
    // Predicated region
    $region38: #{tpu_custom_call.1} parent=1 // pred_check
      _
    $region39: #{tpu_custom_call.1} parent=1 // pred_check_branch
      %74 = sbr.rel (0) target = $region41
    $region40: #{tpu_custom_call.1} parent=1 // pred_region
      %75 = dma.done [#allocation7], 512
    $region41: #{tpu_custom_call.1} parent=1 // pred_fallthru
      _
    // Predicated region
    $region42: #{tpu_custom_call.1} parent=1 // pred_check
      _
    $region43: #{tpu_custom_call.1} parent=1 // pred_check_branch
      %77 = sbr.rel (0) target = $region45
    $region44: #{tpu_custom_call.1} parent=1 // pred_region
      %78 = dma.done [#allocation10], 512
    $region45: #{tpu_custom_call.1} parent=1 // pred_fallthru
      _
    %v79 = vld [vmem:[#allocation3] sm:$0xff]
    %v80 = vld [vmem:[#allocation6] sm:$0xff]
    %v81 = vld [vmem:[#allocation8] sm:$0xff]
    %v82 = vld [vmem:[#allocation8 + $0x8] sm:$0xff]
    %v83 = vld [vmem:[#allocation8 + $0x10] sm:$0xff]
    %v84 = vld [vmem:[#allocation8 + $0x18] sm:$0xff]
    %v85 = vld [vmem:[#allocation9] sm:$0xff]
    %v86 = vld [vmem:[#allocation9 + $0x8] sm:$0xff]
    %v87 = vld [vmem:[#allocation9 + $0x10] sm:$0xff]
    %v88 = vld [vmem:[#allocation9 + $0x18] sm:$0xff]
    %vm89 = vcmask 261120
    %v91 = vsel %vm89, %v80, 0
    %93 = vmatprep.subr.mxu0 0.0
    %94 = vmatpush1.msra.mxu0 %v85
    %95 = vmatprep.subr.mxu0 0.0
    %96 = vmatpush1.msra.mxu0 %v86
    %97 = vmatprep.subr.mxu0 0.0
    %98 = vmatpush1.msra.mxu0 %v87
    %99 = vmatprep.subr.mxu0 0.0
    %100 = vmatpush1.msra.mxu0 %v88
    %101 = vmatprep.subr.mxu0 0.0
    %102 = vmatpush1.msra.mxu0 0.0
    %103 = vmatprep.subr.mxu0 0.0
    %104 = vmatpush1.msra.mxu0 0.0
    %105 = vmatprep.subr.mxu0 0.0
    %106 = vmatpush1.msra.mxu0 0.0
    %107 = vmatprep.subr.mxu0 0.0
    %108 = vmatpush1.msra.mxu0 0.0
    %109 = vmatprep.subr.mxu0 0.0
    %110 = vmatpush1.msra.mxu0 0.0
    %111 = vmatprep.subr.mxu0 0.0
    %112 = vmatpush1.msra.mxu0 0.0
    %113 = vmatprep.subr.mxu0 0.0
    %114 = vmatpush1.msra.mxu0 0.0
    %115 = vmatprep.subr.mxu0 0.0
    %116 = vmatpush1.msra.mxu0 0.0
    %117 = vmatprep.subr.mxu0 0.0
    %118 = vmatpush1.msra.mxu0 0.0
    %119 = vmatprep.subr.mxu0 0.0
    %120 = vmatpush1.msra.mxu0 0.0
    %121 = vmatprep.subr.mxu0 0.0
    %122 = vmatpush1.msra.mxu0 0.0
    %123 = vmatprep.subr.mxu0 0.0
    %124 = vmatpush1.msra.mxu0 0.0
    %125 = vmatprep.subr.mxu0 0.0
    %126 = vmatpush1.msra.mxu0 0.0
    %127 = vmatprep.subr.mxu0 0.0
    %128 = vmatpush1.msra.mxu0 0.0
    %129 = vmatprep.subr.mxu0 0.0
    %130 = vmatpush1.msra.mxu0 0.0
    %131 = vmatprep.subr.mxu0 0.0
    %132 = vmatpush1.msra.mxu0 0.0
    %133 = vmatprep.subr.mxu0 0.0
    %134 = vmatpush1.msra.mxu0 0.0
    %135 = vmatprep.subr.mxu0 0.0
    %136 = vmatpush1.msra.mxu0 0.0
    %137 = vmatprep.subr.mxu0 0.0
    %138 = vmatpush1.msra.mxu0 0.0
    %139 = vmatprep.subr.mxu0 0.0
    %140 = vmatpush1.msra.mxu0 0.0
    %141 = vmatprep.subr.mxu0 0.0
    %142 = vmatpush1.msra.mxu0 0.0
    %143 = vmatprep.subr.mxu0 0.0
    %144 = vmatpush1.msra.mxu0 0.0
    %145 = vmatprep.subr.mxu0 0.0
    %146 = vmatpush1.msra.mxu0 0.0
    %147 = vmatprep.subr.mxu0 0.0
    %148 = vmatpush1.msra.mxu0 0.0
    %149 = vmatprep.subr.mxu0 0.0
    %150 = vmatpush1.msra.mxu0 0.0
    %151 = vmatprep.subr.mxu0 0.0
    %152 = vmatpush1.msra.mxu0 0.0
    %153 = vmatprep.subr.mxu0 0.0
    %154 = vmatpush1.msra.mxu0 0.0
    %155 = vmatprep.subr.mxu0 0.0
    %156 = vmatpush1.msra.mxu0 0.0
    %157 = vmatprep.mubr.f32.mxu0 0.0
    %158 = vmatmul.mubr.f32.gmra.mrb[0].mxu0 %v91
    %v159 = vpop.f32.mrb[0].mxu0
    %v160 = vadd.f32 0.0, %v159
    %v161 = vpop.f32.mrb[0].mxu0
    %162 = vdwg.mxu0
    %v164 = vsel %vm89, %v79, 0
    %166 = vmatprep.subr.mxu0 0.0
    %167 = vmatpush1.msra.mxu0 %v81
    %168 = vmatprep.subr.mxu0 0.0
    %169 = vmatpush1.msra.mxu0 %v82
    %170 = vmatprep.subr.mxu0 0.0
    %171 = vmatpush1.msra.mxu0 %v83
    %172 = vmatprep.subr.mxu0 0.0
    %173 = vmatpush1.msra.mxu0 %v84
    %174 = vmatprep.subr.mxu0 0.0
    %175 = vmatpush1.msra.mxu0 0.0
    %176 = vmatprep.subr.mxu0 0.0
    %177 = vmatpush1.msra.mxu0 0.0
    %178 = vmatprep.subr.mxu0 0.0
    %179 = vmatpush1.msra.mxu0 0.0
    %180 = vmatprep.subr.mxu0 0.0
    %181 = vmatpush1.msra.mxu0 0.0
    %182 = vmatprep.subr.mxu0 0.0
    %183 = vmatpush1.msra.mxu0 0.0
    %184 = vmatprep.subr.mxu0 0.0
    %185 = vmatpush1.msra.mxu0 0.0
    %186 = vmatprep.subr.mxu0 0.0
    %187 = vmatpush1.msra.mxu0 0.0
    %188 = vmatprep.subr.mxu0 0.0
    %189 = vmatpush1.msra.mxu0 0.0
    %190 = vmatprep.subr.mxu0 0.0
    %191 = vmatpush1.msra.mxu0 0.0
    %192 = vmatprep.subr.mxu0 0.0
    %193 = vmatpush1.msra.mxu0 0.0
    %194 = vmatprep.subr.mxu0 0.0
    %195 = vmatpush1.msra.mxu0 0.0
    %196 = vmatprep.subr.mxu0 0.0
    %197 = vmatpush1.msra.mxu0 0.0
    %198 = vmatprep.subr.mxu0 0.0
    %199 = vmatpush1.msra.mxu0 0.0
    %200 = vmatprep.subr.mxu0 0.0
    %201 = vmatpush1.msra.mxu0 0.0
    %202 = vmatprep.subr.mxu0 0.0
    %203 = vmatpush1.msra.mxu0 0.0
    %204 = vmatprep.subr.mxu0 0.0
    %205 = vmatpush1.msra.mxu0 0.0
    %206 = vmatprep.subr.mxu0 0.0
    %207 = vmatpush1.msra.mxu0 0.0
    %208 = vmatprep.subr.mxu0 0.0
    %209 = vmatpush1.msra.mxu0 0.0
    %210 = vmatprep.subr.mxu0 0.0
    %211 = vmatpush1.msra.mxu0 0.0
    %212 = vmatprep.subr.mxu0 0.0
    %213 = vmatpush1.msra.mxu0 0.0
    %214 = vmatprep.subr.mxu0 0.0
    %215 = vmatpush1.msra.mxu0 0.0
    %216 = vmatprep.subr.mxu0 0.0
    %217 = vmatpush1.msra.mxu0 0.0
    %218 = vmatprep.subr.mxu0 0.0
    %219 = vmatpush1.msra.mxu0 0.0
    %220 = vmatprep.subr.mxu0 0.0
    %221 = vmatpush1.msra.mxu0 0.0
    %222 = vmatprep.subr.mxu0 0.0
    %223 = vmatpush1.msra.mxu0 0.0
    %224 = vmatprep.subr.mxu0 0.0
    %225 = vmatpush1.msra.mxu0 0.0
    %226 = vmatprep.subr.mxu0 0.0
    %227 = vmatpush1.msra.mxu0 0.0
    %228 = vmatprep.subr.mxu0 0.0
    %229 = vmatpush1.msra.mxu0 0.0
    %230 = vmatprep.mubr.f32.mxu0 0.0
    %231 = vmatmul.mubr.f32.gmra.mrb[0].mxu0 %v164
    %v232 = vpop.f32.mrb[0].mxu0
    %v233 = vadd.f32 %v160, %v232
    %v234 = vpop.f32.mrb[0].mxu0
    %235 = vdwg.mxu0
    %v236 = vld [vmem:[%s4] sm:$0x1]
    %v238 = vlaneseq
    %v239 = vshrl.u32 %v238, 7
    %v240 = vsub.s32 0, %v239
    %v241 = vrot.slane %v236, %v240
    %v243 = vadd.f32 %v233, %v241
    %v244 = vmax.f32 %v243, 0.0
    %v245 = vld [vmem:[%s5] sm:$0x1]
    %v247 = vlaneseq
    %v248 = vshrl.u32 %v247, 7
    %v249 = vsub.s32 0, %v248
    %v250 = vrot.slane %v245, %v249
    %v252 = vmul.f32 %v244, %v250
    %v253 = vsel %vm89, %v252, 0.0
    %254 = vadd.xlane.f32.xlu0 %v253
    %v255 = vpop.xlane.xlu0 %254
    %s256 = sld [smem:[#allocation2]]
    %v257 = vstv %s256
    %v258 = vadd.f32 %v255, %v257
    %v259 = vxor.u32 %v258, 2147483648
    %v260 = vmul.f32 %v259, 1.442695
    %v261 = vpow.pop %v260
    %v262 = vadd.f32 %v261, 1.0
    %v263 = vrcp.pop %v262
    %v264 = vmul.f32 1.0, %v263
    %v265 = vsub.f32 %v79, %v80
    %v266 = vmul.f32 %v264, %v265
    %v267 = vadd.f32 %v80, %v266
    %268 = vst.msk [vmem:[#allocation11] sm:$0xff] %vm89, %v267
    // Predicated region
    $region46: #{tpu_custom_call.1} parent=1 // pred_check
      _
    $region47: #{tpu_custom_call.1} parent=1 // pred_check_branch
      %270 = sbr.rel (0) target = $region49
    $region48: #{tpu_custom_call.1} parent=1 // pred_region
      %s272 = ssub.s32 128, 128
      %273 = vsyncadd [#allocation5], %s272
      %s275 = sshll.u32 [#allocation11], 4
      %s276 = int_to_ptr.vmem [resolvable:$true] %s275
      %278 = dma.vmem_to_hbm [thread:$0]  %s276, 128, %s7, [#allocation5]
    $region49: #{tpu_custom_call.1} parent=1 // pred_fallthru
      _
    // Predicated region
    $region50: #{tpu_custom_call.1} parent=1 // pred_check
      _
    $region51: #{tpu_custom_call.1} parent=1 // pred_check_branch
      %280 = sbr.rel (0) target = $region53
    $region52: #{tpu_custom_call.1} parent=1 // pred_region
      %281 = dma.done [#allocation5], 128
    $region53: #{tpu_custom_call.1} parent=1 // pred_fallthru
      _
    %282 = vsyncpa [#allocation4], 1
    %283 = vsyncpa [#allocation7], 1
    %284 = vsyncpa [#allocation10], 1
    %285 = vsyncpa [#allocation5], 1

</llo_original>
